<compile_context>
chip_gen: v6e
topology: v6e:2x2x1
jax: 0.10.0
libtpu: 0.0.40
codegen_flags: <defaults>
</compile_context>

<pallas_src>
import functools

import jax
import jax.numpy as jnp
import numpy as np
from jax.experimental import pallas as pl
from jax.experimental.pallas import tpu as pltpu


# ----------------------------------------------------------------------------
# Fused kernel
# ----------------------------------------------------------------------------
def _shift_flat(x, d):
    """shifted[:, j] = x[:, j + d] if 0 <= j + d < n else 0 (static d)."""
    n = x.shape[-1]
    if d == 0:
        return x
    pad = jnp.zeros((x.shape[0], abs(d)), x.dtype)
    if d > 0:
        return jnp.concatenate([x[:, d:], pad], axis=-1)
    return jnp.concatenate([pad, x[:, : n + d]], axis=-1)


def _inverted_residual_kernel(x_ref, w1_ref, b1_ref, wd_ref, b2_ref,
                              w3_ref, b3_ref, o_ref, *, bf, H, W):
    # x_ref : (1, Cin, H*W)   w1_ref: (bf, Cin)  (chunk + BN scale folded in)
    # wd_ref: (bf, 9)         w3_ref: (bf, bf)   b*_ref: (bf, 1)
    # o_ref : (1, Cout, H*W)  with Cout == Cin for stride=1
    HW = H * W
    x = x_ref[0].astype(jnp.float32)                     # (Cin, H*W)

    # ---- stage 1: 1x1 conv (+BN scale folded) + bias + ReLU -----------------
    t1 = jnp.dot(w1_ref[...], x, preferred_element_type=jnp.float32)
    t1 = jnp.maximum(t1 + b1_ref[...], 0.0)              # (bf, H*W)

    # ---- stage 2: depthwise 3x3, stride 1, pad 1 (+BN) ----------------------
    col = jax.lax.broadcasted_iota(jnp.int32, (1, HW), 1)
    ww = col % W                                          # hoisted out of tap loop
    acc = jnp.zeros((bf, HW), jnp.float32)
    for kh in range(3):                                   # static unrolled taps
        dh = kh - 1
        for kw in range(3):
            dw = kw - 1
            shifted = _shift_flat(t1, dh * W + dw)        # H border -> zero fill
            if dw != 0:                                   # W border -> mask
                shifted = jnp.where((ww + dw >= 0) & (ww + dw < W), shifted, 0.0)
            k = kh * 3 + kw
            tap = wd_ref[:, k:k + 1]                      # (bf, 1), BN-scaled
            acc = acc + shifted * tap
    t2 = acc + b2_ref[...]

    # ---- stage 3: 1x1 conv (+BN scale folded) + bias + ReLU -----------------
    t3 = jnp.dot(w3_ref[...], t2, preferred_element_type=jnp.float32)
    t3 = jnp.maximum(t3 + b3_ref[...], 0.0)               # (bf, H*W)

    # ---- fused channel concat: [x1 passthrough ; branch2 output] ------------
    o_ref[0] = jnp.concatenate([x[:bf, :], t3], axis=0).astype(o_ref.dtype)


# ----------------------------------------------------------------------------
# InvertedResidual forward (stride = 1 case: chunk / branch2 / concat)
# ----------------------------------------------------------------------------
def inverted_residual_forward(x_nchw, params, stride):
    if stride != 1:
        # TODO(synk): stride>1 (branch1 + strided depthwise conv) not implemented.
        raise NotImplementedError("only stride=1 is implemented")
    N, Cin, H, W = x_nchw.shape
    bf = Cin // 2
    HW = H * W
    dtype = x_nchw.dtype

    # Fold BN scales into conv weights; fold the channel chunk into w1 so the
    # kernel matmuls against the full channel dim without unaligned slices.
    w1s = params["w1"] * params["s1"][:, None]                       # (bf, bf)
    w1_eff = jnp.concatenate([jnp.zeros((bf, bf), w1s.dtype), w1s], axis=1)
    wd_eff = params["wd"] * params["s2"][:, None]                    # (bf, 9)
    w3_eff = params["w3"] * params["s3"][:, None]                    # (bf, bf)
    b1 = params["b1"].reshape(bf, 1).astype(jnp.float32)
    b2 = params["b2"].reshape(bf, 1).astype(jnp.float32)
    b3 = params["b3"].reshape(bf, 1).astype(jnp.float32)

    x_flat = x_nchw.reshape(N, Cin, HW)      # free reshape (no transpose, no copy)

    kernel = functools.partial(_inverted_residual_kernel, bf=bf, H=H, W=W)
    rep2 = lambda n: (0, 0)                  # weights replicated across grid steps

    out = pl.pallas_call(
        kernel,
        out_shape=jax.ShapeDtypeStruct((N, Cin, HW), dtype),
        grid=(N,),
        in_specs=[
            pl.BlockSpec((1, Cin, HW), lambda n: (n, 0, 0)),
            pl.BlockSpec((bf, Cin), rep2),
            pl.BlockSpec((bf, 1), rep2),
            pl.BlockSpec((bf, 9), rep2),
            pl.BlockSpec((bf, 1), rep2),
            pl.BlockSpec((bf, bf), rep2),
            pl.BlockSpec((bf, 1), rep2),
        ],
        out_specs=pl.BlockSpec((1, Cin, HW), lambda n: (n, 0, 0)),
        compiler_params=pltpu.CompilerParams(
            dimension_semantics=("parallel",)),
    )(x_flat, w1_eff, b1, wd_eff, b2, w3_eff, b3)
    return out.reshape(N, Cin, H, W)


# ----------------------------------------------------------------------------
# Pure-JAX reference (lax convolutions) for correctness checking
# ----------------------------------------------------------------------------
def reference_forward(x, p, stride):
    assert stride == 1
    bf = x.shape[1] // 2
    x1, x2 = x[:, :bf], x[:, bf:]

    def bn(y, scale, bias):
        return y * scale.reshape(1, -1, 1, 1) + bias.reshape(1, -1, 1, 1)

    dn = ('NCHW', 'OIHW', 'NCHW')
    w1 = p["w1"][:, :, None, None]                       # (Cout, Cin, 1, 1)
    y = jax.lax.conv_general_dilated(x2, w1, (1, 1), 'VALID', dimension_numbers=dn)
    y = jnp.maximum(bn(y, p["s1"], p["b1"]), 0.0)

    wd = p["wd"].reshape(bf, 3, 3)[:, None, :, :]        # (C, 1, 3, 3), groups=C
    y = jax.lax.conv_general_dilated(y, wd, (1, 1), ((1, 1), (1, 1)),
                                     dimension_numbers=dn, feature_group_count=bf)
    y = bn(y, p["s2"], p["b2"])

    w3 = p["w3"][:, :, None, None]
    y = jax.lax.conv_general_dilated(y, w3, (1, 1), 'VALID', dimension_numbers=dn)
    y = jnp.maximum(bn(y, p["s3"], p["b3"]), 0.0)
    return jnp.concatenate([x1, y], axis=1)


# ----------------------------------------------------------------------------
# Deterministic parameter construction
# ----------------------------------------------------------------------------
def fold_bn(gamma, beta, mean, var, eps=1e-5):
    scale = gamma / jnp.sqrt(var + eps)
    bias = beta - mean * scale
    return scale, bias


if __name__ == "__main__":
    key = jax.random.PRNGKey(0)
    inp = oup = 4                     # stride=1 requires inp == 2 * branch_features
    stride = 1
    bf = oup // 2
    N, H, W = 2, 16, 16

    keys = jax.random.split(key, 8)
    x = jax.random.normal(keys[0], (N, inp, H, W), jnp.float32)

    def bn_params(k):
        k1, k2, k3, k4 = jax.random.split(k, 4)
        gamma = 1.0 + 0.1 * jax.random.normal(k1, (bf,), jnp.float32)
        beta = 0.1 * jax.random.normal(k2, (bf,), jnp.float32)
        mean = 0.1 * jax.random.normal(k3, (bf,), jnp.float32)
        var = jnp.abs(jax.random.normal(k4, (bf,), jnp.float32)) + 0.5
        return fold_bn(gamma, beta, mean, var)

    # conv weights: w1/w3 stored as (Cout, Cin); depthwise stored as (C, kh*3+kw)
    w1 = 0.5 * jax.random.normal(keys[1], (bf, bf), jnp.float32)
    wd = 0.5 * jax.random.normal(keys[2], (bf, 9), jnp.float32)
    w3 = 0.5 * jax.random.normal(keys[3], (bf, bf), jnp.float32)
    s1, b1 = bn_params(keys[4])
    s2, b2 = bn_params(keys[5])
    s3, b3 = bn_params(keys[6])
    params = dict(w1=w1, s1=s1, b1=b1, wd=wd, s2=s2, b2=b2, w3=w3, s3=s3, b3=b3)

    out = jax.block_until_ready(inverted_residual_forward(x, params, stride))
    ref = jax.block_until_ready(reference_forward(x, params, stride))

    assert out.shape == (N, oup, H, W)
    np.testing.assert_allclose(np.asarray(out), np.asarray(ref), rtol=1e-4, atol=1e-4)
    print("KERNEL_OK")
</pallas_src>

<mosaic_0001>
module attributes {stable_mosaic.version = 11 : i64} {
  func.func @_inverted_residual_kernel(%arg0: i32, %arg1: memref<1x4x256xf32, #tpu.memory_space<vmem>>, %arg2: memref<2x4xf32, #tpu.memory_space<vmem>>, %arg3: memref<2x1xf32, #tpu.memory_space<vmem>>, %arg4: memref<2x9xf32, #tpu.memory_space<vmem>>, %arg5: memref<2x1xf32, #tpu.memory_space<vmem>>, %arg6: memref<2x2xf32, #tpu.memory_space<vmem>>, %arg7: memref<2x1xf32, #tpu.memory_space<vmem>>, %arg8: memref<1x4x256xf32, #tpu.memory_space<vmem>>) attributes {dimension_semantics = [#tpu.dimension_semantics<parallel>], iteration_bounds = array<i64: 2>, scalar_prefetch = 0 : i64, scratch_operands = 0 : i64, tpu.core_type = #tpu.core_type<tc>, window_params = [{transform_indices = @transform_0, window_bounds = array<i64: 1, 4, 256>}, {pipeline_mode = #tpu.pipeline_mode<synchronous>, transform_indices = @transform_1, window_bounds = array<i64: 2, 4>}, {pipeline_mode = #tpu.pipeline_mode<synchronous>, transform_indices = @transform_2, window_bounds = array<i64: 2, 1>}, {pipeline_mode = #tpu.pipeline_mode<synchronous>, transform_indices = @transform_3, window_bounds = array<i64: 2, 9>}, {pipeline_mode = #tpu.pipeline_mode<synchronous>, transform_indices = @transform_4, window_bounds = array<i64: 2, 1>}, {pipeline_mode = #tpu.pipeline_mode<synchronous>, transform_indices = @transform_5, window_bounds = array<i64: 2, 2>}, {pipeline_mode = #tpu.pipeline_mode<synchronous>, transform_indices = @transform_6, window_bounds = array<i64: 2, 1>}, {transform_indices = @transform_7, window_bounds = array<i64: 1, 4, 256>}]} {
    %c0 = arith.constant 0 : index
    %c0_0 = arith.constant 0 : index
    %c0_1 = arith.constant 0 : index
    %0 = vector.load %arg1[%c0, %c0_0, %c0_1] : memref<1x4x256xf32, #tpu.memory_space<vmem>>, vector<1x4x256xf32>
    %1 = vector.shape_cast %0 : vector<1x4x256xf32> to vector<4x256xf32>
    %c0_2 = arith.constant 0 : index
    %c0_3 = arith.constant 0 : index
    %2 = vector.load %arg2[%c0_2, %c0_3] : memref<2x4xf32, #tpu.memory_space<vmem>>, vector<2x4xf32>
    %cst = arith.constant dense<0.000000e+00> : vector<2x256xf32>
    %3 = tpu.matmul %2, %1, %cst {dimension_numbers = #tpu.dot_dimension_numbers<[1], [0], [0], [1], [0, 0, 1, 1], [], []>} : vector<2x4xf32>, vector<4x256xf32>, vector<2x256xf32> -> vector<2x256xf32>
    %c0_4 = arith.constant 0 : index
    %c0_5 = arith.constant 0 : index
    %4 = vector.load %arg3[%c0_4, %c0_5] : memref<2x1xf32, #tpu.memory_space<vmem>>, vector<2x1xf32>
    %5 = vector.broadcast %4 : vector<2x1xf32> to vector<2x256xf32>
    %6 = arith.addf %3, %5 : vector<2x256xf32>
    %cst_6 = arith.constant 0.000000e+00 : f32
    %7 = vector.broadcast %cst_6 : f32 to vector<2x256xf32>
    %8 = arith.maximumf %6, %7 : vector<2x256xf32>
    %9 = tpu.iota {dimensions = array<i32: 1>} : vector<1x256xi32>
    %c16_i32 = arith.constant 16 : i32
    %c0_i32 = arith.constant 0 : i32
    %10 = arith.cmpi eq, %c16_i32, %c0_i32 : i32
    %c1_i32 = arith.constant 1 : i32
    %11 = arith.select %10, %c1_i32, %c16_i32 : i32
    %12 = vector.broadcast %11 : i32 to vector<1x256xi32>
    %13 = arith.remsi %9, %12 : vector<1x256xi32>
    %c0_i32_7 = arith.constant 0 : i32
    %14 = vector.broadcast %c0_i32_7 : i32 to vector<1x256xi32>
    %15 = arith.cmpi ne, %13, %14 : vector<1x256xi32>
    %c0_i32_8 = arith.constant 0 : i32
    %16 = vector.broadcast %c0_i32_8 : i32 to vector<1x256xi32>
    %17 = arith.cmpi slt, %13, %16 : vector<1x256xi32>
    %c0_i32_9 = arith.constant 0 : i32
    %18 = arith.cmpi slt, %11, %c0_i32_9 : i32
    %19 = vector.broadcast %18 : i1 to vector<1x256xi1>
    %20 = vector.broadcast %19 : vector<1x256xi1> to vector<1x256xi1>
    %21 = arith.xori %17, %20 : vector<1x256xi1>
    %22 = arith.andi %21, %15 : vector<1x256xi1>
    %23 = vector.broadcast %11 : i32 to vector<1x256xi32>
    %24 = arith.addi %13, %23 : vector<1x256xi32>
    %25 = arith.select %22, %24, %13 : vector<1x256xi1>, vector<1x256xi32>
    %cst_10 = arith.constant 0.000000e+00 : f32
    %26 = vector.broadcast %cst_10 : f32 to vector<2x256xf32>
    %cst_11 = arith.constant 0.000000e+00 : f32
    %27 = vector.broadcast %cst_11 : f32 to vector<2x17xf32>
    %28 = vector.extract_strided_slice %8 {offsets = [0, 0], sizes = [2, 239], strides = [1, 1]} : vector<2x256xf32> to vector<2x239xf32>
    %29 = tpu.concatenate %27, %28 in 1 : vector<2x17xf32>, vector<2x239xf32> -> vector<2x256xf32>
    %c-1_i32 = arith.constant -1 : i32
    %30 = vector.broadcast %c-1_i32 : i32 to vector<1x256xi32>
    %31 = arith.addi %25, %30 : vector<1x256xi32>
    %c0_i32_12 = arith.constant 0 : i32
    %32 = vector.broadcast %c0_i32_12 : i32 to vector<1x256xi32>
    %33 = arith.cmpi sge, %31, %32 : vector<1x256xi32>
    %c-1_i32_13 = arith.constant -1 : i32
    %34 = vector.broadcast %c-1_i32_13 : i32 to vector<1x256xi32>
    %35 = arith.addi %25, %34 : vector<1x256xi32>
    %c16_i32_14 = arith.constant 16 : i32
    %36 = vector.broadcast %c16_i32_14 : i32 to vector<1x256xi32>
    %37 = arith.cmpi slt, %35, %36 : vector<1x256xi32>
    %38 = arith.andi %33, %37 : vector<1x256xi1>
    %cst_15 = arith.constant 0.000000e+00 : f32
    %39 = vector.shape_cast %38 : vector<1x256xi1> to vector<1x256xi1>
    %40 = vector.broadcast %39 : vector<1x256xi1> to vector<2x256xi1>
    %41 = vector.broadcast %cst_15 : f32 to vector<2x256xf32>
    %42 = arith.select %40, %29, %41 : vector<2x256xi1>, vector<2x256xf32>
    %c0_16 = arith.constant 0 : index
    %c0_17 = arith.constant 0 : index
    %43 = vector.load %arg4[%c0_16, %c0_17] : memref<2x9xf32, #tpu.memory_space<vmem>>, vector<2x1xf32>
    %44 = vector.broadcast %43 : vector<2x1xf32> to vector<2x256xf32>
    %45 = arith.mulf %42, %44 : vector<2x256xf32>
    %46 = arith.addf %26, %45 : vector<2x256xf32>
    %cst_18 = arith.constant 0.000000e+00 : f32
    %47 = vector.broadcast %cst_18 : f32 to vector<2x16xf32>
    %48 = vector.extract_strided_slice %8 {offsets = [0, 0], sizes = [2, 240], strides = [1, 1]} : vector<2x256xf32> to vector<2x240xf32>
    %49 = tpu.concatenate %47, %48 in 1 : vector<2x16xf32>, vector<2x240xf32> -> vector<2x256xf32>
    %c0_19 = arith.constant 0 : index
    %c1 = arith.constant 1 : index
    %50 = vector.load %arg4[%c0_19, %c1] : memref<2x9xf32, #tpu.memory_space<vmem>>, vector<2x1xf32>
    %51 = vector.broadcast %50 : vector<2x1xf32> to vector<2x256xf32>
    %52 = arith.mulf %49, %51 : vector<2x256xf32>
    %53 = arith.addf %46, %52 : vector<2x256xf32>
    %cst_20 = arith.constant 0.000000e+00 : f32
    %54 = vector.broadcast %cst_20 : f32 to vector<2x15xf32>
    %55 = vector.extract_strided_slice %8 {offsets = [0, 0], sizes = [2, 241], strides = [1, 1]} : vector<2x256xf32> to vector<2x241xf32>
    %56 = tpu.concatenate %54, %55 in 1 : vector<2x15xf32>, vector<2x241xf32> -> vector<2x256xf32>
    %c1_i32_21 = arith.constant 1 : i32
    %57 = vector.broadcast %c1_i32_21 : i32 to vector<1x256xi32>
    %58 = arith.addi %25, %57 : vector<1x256xi32>
    %c0_i32_22 = arith.constant 0 : i32
    %59 = vector.broadcast %c0_i32_22 : i32 to vector<1x256xi32>
    %60 = arith.cmpi sge, %58, %59 : vector<1x256xi32>
    %c1_i32_23 = arith.constant 1 : i32
    %61 = vector.broadcast %c1_i32_23 : i32 to vector<1x256xi32>
    %62 = arith.addi %25, %61 : vector<1x256xi32>
    %c16_i32_24 = arith.constant 16 : i32
    %63 = vector.broadcast %c16_i32_24 : i32 to vector<1x256xi32>
    %64 = arith.cmpi slt, %62, %63 : vector<1x256xi32>
    %65 = arith.andi %60, %64 : vector<1x256xi1>
    %cst_25 = arith.constant 0.000000e+00 : f32
    %66 = vector.shape_cast %65 : vector<1x256xi1> to vector<1x256xi1>
    %67 = vector.broadcast %66 : vector<1x256xi1> to vector<2x256xi1>
    %68 = vector.broadcast %cst_25 : f32 to vector<2x256xf32>
    %69 = arith.select %67, %56, %68 : vector<2x256xi1>, vector<2x256xf32>
    %c0_26 = arith.constant 0 : index
    %c2 = arith.constant 2 : index
    %70 = vector.load %arg4[%c0_26, %c2] : memref<2x9xf32, #tpu.memory_space<vmem>>, vector<2x1xf32>
    %71 = vector.broadcast %70 : vector<2x1xf32> to vector<2x256xf32>
    %72 = arith.mulf %69, %71 : vector<2x256xf32>
    %73 = arith.addf %53, %72 : vector<2x256xf32>
    %cst_27 = arith.constant 0.000000e+00 : f32
    %74 = vector.broadcast %cst_27 : f32 to vector<2x1xf32>
    %75 = vector.extract_strided_slice %8 {offsets = [0, 0], sizes = [2, 255], strides = [1, 1]} : vector<2x256xf32> to vector<2x255xf32>
    %76 = tpu.concatenate %74, %75 in 1 : vector<2x1xf32>, vector<2x255xf32> -> vector<2x256xf32>
    %c-1_i32_28 = arith.constant -1 : i32
    %77 = vector.broadcast %c-1_i32_28 : i32 to vector<1x256xi32>
    %78 = arith.addi %25, %77 : vector<1x256xi32>
    %c0_i32_29 = arith.constant 0 : i32
    %79 = vector.broadcast %c0_i32_29 : i32 to vector<1x256xi32>
    %80 = arith.cmpi sge, %78, %79 : vector<1x256xi32>
    %c-1_i32_30 = arith.constant -1 : i32
    %81 = vector.broadcast %c-1_i32_30 : i32 to vector<1x256xi32>
    %82 = arith.addi %25, %81 : vector<1x256xi32>
    %c16_i32_31 = arith.constant 16 : i32
    %83 = vector.broadcast %c16_i32_31 : i32 to vector<1x256xi32>
    %84 = arith.cmpi slt, %82, %83 : vector<1x256xi32>
    %85 = arith.andi %80, %84 : vector<1x256xi1>
    %cst_32 = arith.constant 0.000000e+00 : f32
    %86 = vector.shape_cast %85 : vector<1x256xi1> to vector<1x256xi1>
    %87 = vector.broadcast %86 : vector<1x256xi1> to vector<2x256xi1>
    %88 = vector.broadcast %cst_32 : f32 to vector<2x256xf32>
    %89 = arith.select %87, %76, %88 : vector<2x256xi1>, vector<2x256xf32>
    %c0_33 = arith.constant 0 : index
    %c3 = arith.constant 3 : index
    %90 = vector.load %arg4[%c0_33, %c3] : memref<2x9xf32, #tpu.memory_space<vmem>>, vector<2x1xf32>
    %91 = vector.broadcast %90 : vector<2x1xf32> to vector<2x256xf32>
    %92 = arith.mulf %89, %91 : vector<2x256xf32>
    %93 = arith.addf %73, %92 : vector<2x256xf32>
    %c0_34 = arith.constant 0 : index
    %c4 = arith.constant 4 : index
    %94 = vector.load %arg4[%c0_34, %c4] : memref<2x9xf32, #tpu.memory_space<vmem>>, vector<2x1xf32>
    %95 = vector.broadcast %94 : vector<2x1xf32> to vector<2x256xf32>
    %96 = arith.mulf %8, %95 : vector<2x256xf32>
    %97 = arith.addf %93, %96 : vector<2x256xf32>
    %cst_35 = arith.constant 0.000000e+00 : f32
    %98 = vector.broadcast %cst_35 : f32 to vector<2x1xf32>
    %99 = vector.extract_strided_slice %8 {offsets = [0, 1], sizes = [2, 255], strides = [1, 1]} : vector<2x256xf32> to vector<2x255xf32>
    %100 = tpu.concatenate %99, %98 in 1 : vector<2x255xf32>, vector<2x1xf32> -> vector<2x256xf32>
    %c1_i32_36 = arith.constant 1 : i32
    %101 = vector.broadcast %c1_i32_36 : i32 to vector<1x256xi32>
    %102 = arith.addi %25, %101 : vector<1x256xi32>
    %c0_i32_37 = arith.constant 0 : i32
    %103 = vector.broadcast %c0_i32_37 : i32 to vector<1x256xi32>
    %104 = arith.cmpi sge, %102, %103 : vector<1x256xi32>
    %c1_i32_38 = arith.constant 1 : i32
    %105 = vector.broadcast %c1_i32_38 : i32 to vector<1x256xi32>
    %106 = arith.addi %25, %105 : vector<1x256xi32>
    %c16_i32_39 = arith.constant 16 : i32
    %107 = vector.broadcast %c16_i32_39 : i32 to vector<1x256xi32>
    %108 = arith.cmpi slt, %106, %107 : vector<1x256xi32>
    %109 = arith.andi %104, %108 : vector<1x256xi1>
    %cst_40 = arith.constant 0.000000e+00 : f32
    %110 = vector.shape_cast %109 : vector<1x256xi1> to vector<1x256xi1>
    %111 = vector.broadcast %110 : vector<1x256xi1> to vector<2x256xi1>
    %112 = vector.broadcast %cst_40 : f32 to vector<2x256xf32>
    %113 = arith.select %111, %100, %112 : vector<2x256xi1>, vector<2x256xf32>
    %c0_41 = arith.constant 0 : index
    %c5 = arith.constant 5 : index
    %114 = vector.load %arg4[%c0_41, %c5] : memref<2x9xf32, #tpu.memory_space<vmem>>, vector<2x1xf32>
    %115 = vector.broadcast %114 : vector<2x1xf32> to vector<2x256xf32>
    %116 = arith.mulf %113, %115 : vector<2x256xf32>
    %117 = arith.addf %97, %116 : vector<2x256xf32>
    %cst_42 = arith.constant 0.000000e+00 : f32
    %118 = vector.broadcast %cst_42 : f32 to vector<2x15xf32>
    %119 = vector.extract_strided_slice %8 {offsets = [0, 15], sizes = [2, 241], strides = [1, 1]} : vector<2x256xf32> to vector<2x241xf32>
    %120 = tpu.concatenate %119, %118 in 1 : vector<2x241xf32>, vector<2x15xf32> -> vector<2x256xf32>
    %c-1_i32_43 = arith.constant -1 : i32
    %121 = vector.broadcast %c-1_i32_43 : i32 to vector<1x256xi32>
    %122 = arith.addi %25, %121 : vector<1x256xi32>
    %c0_i32_44 = arith.constant 0 : i32
    %123 = vector.broadcast %c0_i32_44 : i32 to vector<1x256xi32>
    %124 = arith.cmpi sge, %122, %123 : vector<1x256xi32>
    %c-1_i32_45 = arith.constant -1 : i32
    %125 = vector.broadcast %c-1_i32_45 : i32 to vector<1x256xi32>
    %126 = arith.addi %25, %125 : vector<1x256xi32>
    %c16_i32_46 = arith.constant 16 : i32
    %127 = vector.broadcast %c16_i32_46 : i32 to vector<1x256xi32>
    %128 = arith.cmpi slt, %126, %127 : vector<1x256xi32>
    %129 = arith.andi %124, %128 : vector<1x256xi1>
    %cst_47 = arith.constant 0.000000e+00 : f32
    %130 = vector.shape_cast %129 : vector<1x256xi1> to vector<1x256xi1>
    %131 = vector.broadcast %130 : vector<1x256xi1> to vector<2x256xi1>
    %132 = vector.broadcast %cst_47 : f32 to vector<2x256xf32>
    %133 = arith.select %131, %120, %132 : vector<2x256xi1>, vector<2x256xf32>
    %c0_48 = arith.constant 0 : index
    %c6 = arith.constant 6 : index
    %134 = vector.load %arg4[%c0_48, %c6] : memref<2x9xf32, #tpu.memory_space<vmem>>, vector<2x1xf32>
    %135 = vector.broadcast %134 : vector<2x1xf32> to vector<2x256xf32>
    %136 = arith.mulf %133, %135 : vector<2x256xf32>
    %137 = arith.addf %117, %136 : vector<2x256xf32>
    %cst_49 = arith.constant 0.000000e+00 : f32
    %138 = vector.broadcast %cst_49 : f32 to vector<2x16xf32>
    %139 = vector.extract_strided_slice %8 {offsets = [0, 16], sizes = [2, 240], strides = [1, 1]} : vector<2x256xf32> to vector<2x240xf32>
    %140 = tpu.concatenate %139, %138 in 1 : vector<2x240xf32>, vector<2x16xf32> -> vector<2x256xf32>
    %c0_50 = arith.constant 0 : index
    %c7 = arith.constant 7 : index
    %141 = vector.load %arg4[%c0_50, %c7] : memref<2x9xf32, #tpu.memory_space<vmem>>, vector<2x1xf32>
    %142 = vector.broadcast %141 : vector<2x1xf32> to vector<2x256xf32>
    %143 = arith.mulf %140, %142 : vector<2x256xf32>
    %144 = arith.addf %137, %143 : vector<2x256xf32>
    %cst_51 = arith.constant 0.000000e+00 : f32
    %145 = vector.broadcast %cst_51 : f32 to vector<2x17xf32>
    %146 = vector.extract_strided_slice %8 {offsets = [0, 17], sizes = [2, 239], strides = [1, 1]} : vector<2x256xf32> to vector<2x239xf32>
    %147 = tpu.concatenate %146, %145 in 1 : vector<2x239xf32>, vector<2x17xf32> -> vector<2x256xf32>
    %c1_i32_52 = arith.constant 1 : i32
    %148 = vector.broadcast %c1_i32_52 : i32 to vector<1x256xi32>
    %149 = arith.addi %25, %148 : vector<1x256xi32>
    %c0_i32_53 = arith.constant 0 : i32
    %150 = vector.broadcast %c0_i32_53 : i32 to vector<1x256xi32>
    %151 = arith.cmpi sge, %149, %150 : vector<1x256xi32>
    %c1_i32_54 = arith.constant 1 : i32
    %152 = vector.broadcast %c1_i32_54 : i32 to vector<1x256xi32>
    %153 = arith.addi %25, %152 : vector<1x256xi32>
    %c16_i32_55 = arith.constant 16 : i32
    %154 = vector.broadcast %c16_i32_55 : i32 to vector<1x256xi32>
    %155 = arith.cmpi slt, %153, %154 : vector<1x256xi32>
    %156 = arith.andi %151, %155 : vector<1x256xi1>
    %cst_56 = arith.constant 0.000000e+00 : f32
    %157 = vector.shape_cast %156 : vector<1x256xi1> to vector<1x256xi1>
    %158 = vector.broadcast %157 : vector<1x256xi1> to vector<2x256xi1>
    %159 = vector.broadcast %cst_56 : f32 to vector<2x256xf32>
    %160 = arith.select %158, %147, %159 : vector<2x256xi1>, vector<2x256xf32>
    %c0_57 = arith.constant 0 : index
    %c8 = arith.constant 8 : index
    %161 = vector.load %arg4[%c0_57, %c8] : memref<2x9xf32, #tpu.memory_space<vmem>>, vector<2x1xf32>
    %162 = vector.broadcast %161 : vector<2x1xf32> to vector<2x256xf32>
    %163 = arith.mulf %160, %162 : vector<2x256xf32>
    %164 = arith.addf %144, %163 : vector<2x256xf32>
    %c0_58 = arith.constant 0 : index
    %c0_59 = arith.constant 0 : index
    %165 = vector.load %arg5[%c0_58, %c0_59] : memref<2x1xf32, #tpu.memory_space<vmem>>, vector<2x1xf32>
    %166 = vector.broadcast %165 : vector<2x1xf32> to vector<2x256xf32>
    %167 = arith.addf %164, %166 : vector<2x256xf32>
    %c0_60 = arith.constant 0 : index
    %c0_61 = arith.constant 0 : index
    %168 = vector.load %arg6[%c0_60, %c0_61] : memref<2x2xf32, #tpu.memory_space<vmem>>, vector<2x2xf32>
    %cst_62 = arith.constant dense<0.000000e+00> : vector<2x256xf32>
    %169 = tpu.matmul %168, %167, %cst_62 {dimension_numbers = #tpu.dot_dimension_numbers<[1], [0], [0], [1], [0, 0, 1, 1], [], []>} : vector<2x2xf32>, vector<2x256xf32>, vector<2x256xf32> -> vector<2x256xf32>
    %c0_63 = arith.constant 0 : index
    %c0_64 = arith.constant 0 : index
    %170 = vector.load %arg7[%c0_63, %c0_64] : memref<2x1xf32, #tpu.memory_space<vmem>>, vector<2x1xf32>
    %171 = vector.broadcast %170 : vector<2x1xf32> to vector<2x256xf32>
    %172 = arith.addf %169, %171 : vector<2x256xf32>
    %cst_65 = arith.constant 0.000000e+00 : f32
    %173 = vector.broadcast %cst_65 : f32 to vector<2x256xf32>
    %174 = arith.maximumf %172, %173 : vector<2x256xf32>
    %175 = vector.extract_strided_slice %1 {offsets = [0, 0], sizes = [2, 256], strides = [1, 1]} : vector<4x256xf32> to vector<2x256xf32>
    %176 = tpu.concatenate %175, %174 in 0 : vector<2x256xf32>, vector<2x256xf32> -> vector<4x256xf32>
    %c0_66 = arith.constant 0 : index
    %c0_67 = arith.constant 0 : index
    %c0_68 = arith.constant 0 : index
    %177 = vector.load %arg8[%c0_66, %c0_67, %c0_68] : memref<1x4x256xf32, #tpu.memory_space<vmem>>, vector<1x4x256xf32>
    %178 = vector.shape_cast %177 : vector<1x4x256xf32> to vector<4x256xf32>
    %179 = vector.shape_cast %176 : vector<4x256xf32> to vector<1x4x256xf32>
    tpu.vector_store %arg8[%c0_66, %c0_67, %c0_68], %179 {strides = array<i32>} : memref<1x4x256xf32, #tpu.memory_space<vmem>>, vector<1x4x256xf32>,
    return
  }
  func.func @transform_0(%arg0: i32) -> (i32, i32, i32) {
    %c0_i32 = arith.constant 0 : i32
    %c0_i32_0 = arith.constant 0 : i32
    %c0_i32_1 = arith.constant 0 : i32
    return %arg0, %c0_i32, %c0_i32_0 : i32, i32, i32
  }
  func.func @transform_1(%arg0: i32) -> (i32, i32) {
    %c0_i32 = arith.constant 0 : i32
    %c0_i32_0 = arith.constant 0 : i32
    %c0_i32_1 = arith.constant 0 : i32
    return %c0_i32, %c0_i32_0 : i32, i32
  }
  func.func @transform_2(%arg0: i32) -> (i32, i32) {
    %c0_i32 = arith.constant 0 : i32
    %c0_i32_0 = arith.constant 0 : i32
    %c0_i32_1 = arith.constant 0 : i32
    return %c0_i32, %c0_i32_0 : i32, i32
  }
  func.func @transform_3(%arg0: i32) -> (i32, i32) {
    %c0_i32 = arith.constant 0 : i32
    %c0_i32_0 = arith.constant 0 : i32
    %c0_i32_1 = arith.constant 0 : i32
    return %c0_i32, %c0_i32_0 : i32, i32
  }
  func.func @transform_4(%arg0: i32) -> (i32, i32) {
    %c0_i32 = arith.constant 0 : i32
    %c0_i32_0 = arith.constant 0 : i32
    %c0_i32_1 = arith.constant 0 : i32
    return %c0_i32, %c0_i32_0 : i32, i32
  }
  func.func @transform_5(%arg0: i32) -> (i32, i32) {
    %c0_i32 = arith.constant 0 : i32
    %c0_i32_0 = arith.constant 0 : i32
    %c0_i32_1 = arith.constant 0 : i32
    return %c0_i32, %c0_i32_0 : i32, i32
  }
  func.func @transform_6(%arg0: i32) -> (i32, i32) {
    %c0_i32 = arith.constant 0 : i32
    %c0_i32_0 = arith.constant 0 : i32
    %c0_i32_1 = arith.constant 0 : i32
    return %c0_i32, %c0_i32_0 : i32, i32
  }
  func.func @transform_7(%arg0: i32) -> (i32, i32, i32) {
    %c0_i32 = arith.constant 0 : i32
    %c0_i32_0 = arith.constant 0 : i32
    %c0_i32_1 = arith.constant 0 : i32
    return %arg0, %c0_i32, %c0_i32_0 : i32, i32, i32
  }
}

</mosaic_0001>

<llo_original>
// kernel: tpu_custom_call.1
$region0: #{tpu_custom_call.1}
  #allocation0 [shape = 'u32[]', space=smem, size = 0x4, offset = 0x4, fixed_abs, tag = 'smem constant byte address 0x4 - core index']
  #allocation1 [shape = 'u32[144,128]{1,0:T(1,128)}', space=vmem, size = 0x12000, scoped, tag = 'internal scratch']
  %s0 = inlined_call_operand.hbm [shape: f32[2,4,256], index: 0, kind: input, shape index: {}]
  %s1 = inlined_call_operand.vmem [shape: f32[2,4], index: 1, kind: input, shape index: {}]
  %s2 = inlined_call_operand.vmem [shape: f32[2,1], index: 2, kind: input, shape index: {}]
  %s3 = inlined_call_operand.vmem [shape: f32[2,9], index: 3, kind: input, shape index: {}]
  %s4 = inlined_call_operand.vmem [shape: f32[2,1], index: 4, kind: input, shape index: {}]
  %s5 = inlined_call_operand.vmem [shape: f32[2,2], index: 5, kind: input, shape index: {}]
  %s6 = inlined_call_operand.vmem [shape: f32[2,1], index: 6, kind: input, shape index: {}]
  %s7 = inlined_call_operand.hbm [shape: f32[2,4,256], index: 7, kind: output, shape index: {}]
  %s8 = sld [smem:[#allocation0]]
  $region65: #{tpu_custom_call.1} parent=0
    _
  %s10 = ssub.s32 1, %s8
  %s11 = scalar_select 0, %s10, %s8
  $region1: #{tpu_custom_call.1} parent=0
    #allocation2 [shape = 'u8[8192]{0}', space=vmem, size = 0x2000, scoped, tag = 'input window, operand 0']
    #allocation3 [shape = 's32[2]{0}', space=sflag, size = 0x8, scoped, tag = 'scoped memory for tpu_custom_call.1']
    #allocation4 [shape = 's32[2]{0}', space=sflag, size = 0x8, scoped, tag = 'scoped memory for tpu_custom_call.1']
    #allocation5 [shape = 'u8[8192]{0}', space=vmem, size = 0x2000, scoped, tag = 'output window, operand 0']
    %12 = vsyncpa [#allocation3], 0
    %s13 = scalar_lea.sflag [#allocation3], 1
    %14 = vsyncpa %s13, 0
    %15 = vsyncpa [#allocation4], 0
    %s16 = scalar_lea.sflag [#allocation4], 1
    %17 = vsyncpa %s16, 0
    loop: start=0, step=1, limit=4
    $region2: #{tpu_custom_call.1} parent=1 // loop_pre_header
      _
    $region3: #{tpu_custom_call.1} parent=1 // loop_header
      %s19 = sphi 0, %s23
      %p20 = scmp.ge.s32.totalorder %s19, 4
      %s29 = sphi 0, %s31
      %s32 = sphi 0, %s29
      %s33 = sphi 0, %s32
      %s49 = sphi 0, %s33
      %s53 = sphi 0, %s53
      %s55 = sphi 0, %s53
      %s56 = sphi 0, %s55
      %s70 = sphi 0, %s56
      %s74 = sphi 0, %s74
      %s76 = sphi 0, %s74
      %s77 = sphi 0, %s76
      %s91 = sphi 0, %s77
      %s95 = sphi 0, %s95
      %s97 = sphi 0, %s95
      %s98 = sphi 0, %s97
      %s112 = sphi 0, %s98
      %s116 = sphi 0, %s116
      %s118 = sphi 0, %s116
      %s119 = sphi 0, %s118
      %s133 = sphi 0, %s119
      %s137 = sphi 0, %s137
      %s139 = sphi 0, %s137
      %s140 = sphi 0, %s139
      %s154 = sphi 0, %s140
      %s158 = sphi 0, %s158
      %s160 = sphi 0, %s158
      %s161 = sphi 0, %s160
      %s175 = sphi 0, %s161
      %s181 = sphi 0, %s183
      %s184 = sphi 0, %s181
      %s185 = sphi 0, %s184
      %s201 = sphi 0, %s185
    $region4: #{tpu_custom_call.1} parent=1 // loop_header_branch
      %22 = sbr.rel (%p20) target = $region8
    $region5: #{tpu_custom_call.1} parent=1 // loop_body
      %s24 = ssub.s32 %s19, 1
      %s25 = ssub.s32 %s19, 2
      %s26 = sadd.s32 %s19, 1
      %s27 = ssub.s32 %s19, %s26
      %p28 = scmp.eq.s32.totalorder %s27, 0
      %s30 = sadd.s32 %s29, 1
      %s31 = scalar_select %p28, %s29, %s30
      %p34 = pneg %p28
      %p35 = scmp.eq.s32.totalorder %s19, 1
      %p36 = por %p34, %p35
      %p37 = scmp.ne.s32.totalorder %s29, %s32
      %p38 = scmp.eq.s32.totalorder %s19, 0
      %p39 = por %p37, %p38
      %p40 = scmp.ne.s32.totalorder %s29, %s32
      %p41 = scmp.eq.s32.totalorder %s24, 1
      %p42 = por %p40, %p41
      %p43 = scmp.ne.s32.totalorder %s32, %s33
      %p44 = scmp.eq.s32.totalorder %s24, 0
      %p45 = por %p43, %p44
      %p46 = scmp.ne.s32.totalorder %s32, %s33
      %p47 = scmp.eq.s32.totalorder %s25, 1
      %p48 = por %p46, %p47
      %p50 = scmp.ne.s32.totalorder %s33, %s49
      %p51 = scmp.eq.s32.totalorder %s25, 0
      %p52 = por %p50, %p51
      %s54 = sadd.s32 %s53, 1
      %p57 = scmp.eq.s32.totalorder %s19, 1
      %p58 = scmp.ne.s32.totalorder %s53, %s55
      %p59 = scmp.eq.s32.totalorder %s19, 0
      %p60 = por %p58, %p59
      %p61 = scmp.ne.s32.totalorder %s53, %s55
      %p62 = scmp.eq.s32.totalorder %s24, 1
      %p63 = por %p61, %p62
      %p64 = scmp.ne.s32.totalorder %s55, %s56
      %p65 = scmp.eq.s32.totalorder %s24, 0
      %p66 = por %p64, %p65
      %p67 = scmp.ne.s32.totalorder %s55, %s56
      %p68 = scmp.eq.s32.totalorder %s25, 1
      %p69 = por %p67, %p68
      %p71 = scmp.ne.s32.totalorder %s56, %s70
      %p72 = scmp.eq.s32.totalorder %s25, 0
      %p73 = por %p71, %p72
      %s75 = sadd.s32 %s74, 1
      %p78 = scmp.eq.s32.totalorder %s19, 1
      %p79 = scmp.ne.s32.totalorder %s74, %s76
      %p80 = scmp.eq.s32.totalorder %s19, 0
      %p81 = por %p79, %p80
      %p82 = scmp.ne.s32.totalorder %s74, %s76
      %p83 = scmp.eq.s32.totalorder %s24, 1
      %p84 = por %p82, %p83
      %p85 = scmp.ne.s32.totalorder %s76, %s77
      %p86 = scmp.eq.s32.totalorder %s24, 0
      %p87 = por %p85, %p86
      %p88 = scmp.ne.s32.totalorder %s76, %s77
      %p89 = scmp.eq.s32.totalorder %s25, 1
      %p90 = por %p88, %p89
      %p92 = scmp.ne.s32.totalorder %s77, %s91
      %p93 = scmp.eq.s32.totalorder %s25, 0
      %p94 = por %p92, %p93
      %s96 = sadd.s32 %s95, 1
      %p99 = scmp.eq.s32.totalorder %s19, 1
      %p100 = scmp.ne.s32.totalorder %s95, %s97
      %p101 = scmp.eq.s32.totalorder %s19, 0
      %p102 = por %p100, %p101
      %p103 = scmp.ne.s32.totalorder %s95, %s97
      %p104 = scmp.eq.s32.totalorder %s24, 1
      %p105 = por %p103, %p104
      %p106 = scmp.ne.s32.totalorder %s97, %s98
      %p107 = scmp.eq.s32.totalorder %s24, 0
      %p108 = por %p106, %p107
      %p109 = scmp.ne.s32.totalorder %s97, %s98
      %p110 = scmp.eq.s32.totalorder %s25, 1
      %p111 = por %p109, %p110
      %p113 = scmp.ne.s32.totalorder %s98, %s112
      %p114 = scmp.eq.s32.totalorder %s25, 0
      %p115 = por %p113, %p114
      %s117 = sadd.s32 %s116, 1
      %p120 = scmp.eq.s32.totalorder %s19, 1
      %p121 = scmp.ne.s32.totalorder %s116, %s118
      %p122 = scmp.eq.s32.totalorder %s19, 0
      %p123 = por %p121, %p122
      %p124 = scmp.ne.s32.totalorder %s116, %s118
      %p125 = scmp.eq.s32.totalorder %s24, 1
      %p126 = por %p124, %p125
      %p127 = scmp.ne.s32.totalorder %s118, %s119
      %p128 = scmp.eq.s32.totalorder %s24, 0
      %p129 = por %p127, %p128
      %p130 = scmp.ne.s32.totalorder %s118, %s119
      %p131 = scmp.eq.s32.totalorder %s25, 1
      %p132 = por %p130, %p131
      %p134 = scmp.ne.s32.totalorder %s119, %s133
      %p135 = scmp.eq.s32.totalorder %s25, 0
      %p136 = por %p134, %p135
      %s138 = sadd.s32 %s137, 1
      %p141 = scmp.eq.s32.totalorder %s19, 1
      %p142 = scmp.ne.s32.totalorder %s137, %s139
      %p143 = scmp.eq.s32.totalorder %s19, 0
      %p144 = por %p142, %p143
      %p145 = scmp.ne.s32.totalorder %s137, %s139
      %p146 = scmp.eq.s32.totalorder %s24, 1
      %p147 = por %p145, %p146
      %p148 = scmp.ne.s32.totalorder %s139, %s140
      %p149 = scmp.eq.s32.totalorder %s24, 0
      %p150 = por %p148, %p149
      %p151 = scmp.ne.s32.totalorder %s139, %s140
      %p152 = scmp.eq.s32.totalorder %s25, 1
      %p153 = por %p151, %p152
      %p155 = scmp.ne.s32.totalorder %s140, %s154
      %p156 = scmp.eq.s32.totalorder %s25, 0
      %p157 = por %p155, %p156
      %s159 = sadd.s32 %s158, 1
      %p162 = scmp.eq.s32.totalorder %s19, 1
      %p163 = scmp.ne.s32.totalorder %s158, %s160
      %p164 = scmp.eq.s32.totalorder %s19, 0
      %p165 = por %p163, %p164
      %p166 = scmp.ne.s32.totalorder %s158, %s160
      %p167 = scmp.eq.s32.totalorder %s24, 1
      %p168 = por %p166, %p167
      %p169 = scmp.ne.s32.totalorder %s160, %s161
      %p170 = scmp.eq.s32.totalorder %s24, 0
      %p171 = por %p169, %p170
      %p172 = scmp.ne.s32.totalorder %s160, %s161
      %p173 = scmp.eq.s32.totalorder %s25, 1
      %p174 = por %p172, %p173
      %p176 = scmp.ne.s32.totalorder %s161, %s175
      %p177 = scmp.eq.s32.totalorder %s25, 0
      %p178 = por %p176, %p177
      %s179 = ssub.s32 %s19, %s26
      %p180 = scmp.eq.s32.totalorder %s179, 0
      %s182 = sadd.s32 %s181, 1
      %s183 = scalar_select %p180, %s181, %s182
      %p186 = pneg %p180
      %p187 = scmp.eq.s32.totalorder %s19, 1
      %p188 = por %p186, %p187
      %p189 = scmp.ne.s32.totalorder %s181, %s184
      %p190 = scmp.eq.s32.totalorder %s19, 0
      %p191 = por %p189, %p190
      %p192 = scmp.ne.s32.totalorder %s181, %s184
      %p193 = scmp.eq.s32.totalorder %s24, 1
      %p194 = por %p192, %p193
      %p195 = scmp.ne.s32.totalorder %s184, %s185
      %p196 = scmp.eq.s32.totalorder %s24, 0
      %p197 = por %p195, %p196
      %p198 = scmp.ne.s32.totalorder %s184, %s185
      %p199 = scmp.eq.s32.totalorder %s25, 1
      %p200 = por %p198, %p199
      %p202 = scmp.ne.s32.totalorder %s185, %s201
      %p203 = scmp.eq.s32.totalorder %s25, 0
      %p204 = por %p202, %p203
      %p205 = scmp.le.s32.totalorder 1, %s19
      %p206 = scmp.lt.s32.totalorder %s19, 3
      %p207 = pnand %p205, %p206
      %p208 = pneg %p207
      // Predicated region
      $region9: #{tpu_custom_call.1} parent=5 // pred_check
        _
      $region10: #{tpu_custom_call.1} parent=5 // pred_check_branch
        %210 = sbr.rel (%p207) target = $region12
      $region11: #{tpu_custom_call.1} parent=5 // pred_region
        %s211 = ssub.s32 %s19, 1
        // Predicated region
        $region13: #{tpu_custom_call.1} parent=11 // pred_check
          %p212 = pneg %p66
        $region14: #{tpu_custom_call.1} parent=11 // pred_check_branch
          %214 = sbr.rel (%p212) target = $region16
        $region15: #{tpu_custom_call.1} parent=11 // pred_region
          _
        $region16: #{tpu_custom_call.1} parent=11 // pred_fallthru
          _
        // Predicated region
        $region17: #{tpu_custom_call.1} parent=11 // pred_check
          %p215 = pneg %p87
        $region18: #{tpu_custom_call.1} parent=11 // pred_check_branch
          %217 = sbr.rel (%p215) target = $region20
        $region19: #{tpu_custom_call.1} parent=11 // pred_region
          _
        $region20: #{tpu_custom_call.1} parent=11 // pred_fallthru
          _
        // Predicated region
        $region21: #{tpu_custom_call.1} parent=11 // pred_check
          %p218 = pneg %p108
        $region22: #{tpu_custom_call.1} parent=11 // pred_check_branch
          %220 = sbr.rel (%p218) target = $region24
        $region23: #{tpu_custom_call.1} parent=11 // pred_region
          _
        $region24: #{tpu_custom_call.1} parent=11 // pred_fallthru
          _
        // Predicated region
        $region25: #{tpu_custom_call.1} parent=11 // pred_check
          %p221 = pneg %p129
        $region26: #{tpu_custom_call.1} parent=11 // pred_check_branch
          %223 = sbr.rel (%p221) target = $region28
        $region27: #{tpu_custom_call.1} parent=11 // pred_region
          _
        $region28: #{tpu_custom_call.1} parent=11 // pred_fallthru
          _
        // Predicated region
        $region29: #{tpu_custom_call.1} parent=11 // pred_check
          %p224 = pneg %p150
        $region30: #{tpu_custom_call.1} parent=11 // pred_check_branch
          %226 = sbr.rel (%p224) target = $region32
        $region31: #{tpu_custom_call.1} parent=11 // pred_region
          _
        $region32: #{tpu_custom_call.1} parent=11 // pred_fallthru
          _
        // Predicated region
        $region33: #{tpu_custom_call.1} parent=11 // pred_check
          %p227 = pneg %p171
        $region34: #{tpu_custom_call.1} parent=11 // pred_check_branch
          %229 = sbr.rel (%p227) target = $region36
        $region35: #{tpu_custom_call.1} parent=11 // pred_region
          _
        $region36: #{tpu_custom_call.1} parent=11 // pred_fallthru
          _
      $region12: #{tpu_custom_call.1} parent=5 // pred_fallthru
        _
      %p230 = scmp.lt.s32.totalorder %s19, 2
      // Predicated region
      $region37: #{tpu_custom_call.1} parent=5 // pred_check
        %p231 = pneg %p230
      $region38: #{tpu_custom_call.1} parent=5 // pred_check_branch
        %233 = sbr.rel (%p231) target = $region40
      $region39: #{tpu_custom_call.1} parent=5 // pred_region
        // Predicated region
        $region41: #{tpu_custom_call.1} parent=39 // pred_check
          %p234 = pneg %p39
        $region42: #{tpu_custom_call.1} parent=39 // pred_check_branch
          %236 = sbr.rel (%p234) target = $region44
        $region43: #{tpu_custom_call.1} parent=39 // pred_region
          %s237 = sand.u32 %s29, 1
          %s238 = scalar_lea.sflag [#allocation3], %s237
          %s239 = sand.u32 %s29, 1
          %s240 = smul.addr %s239, 8
          %s241 = scalar_lea.vmem [#allocation2], %s240
          %s243 = ssub.s32 128, 128
          %244 = vsyncadd %s238, %s243
          %s245 = smul.addr %s19, 2
          %s246 = smul.addr %s245, 64
          %s247 = scalar_lea.hbm %s0, %s246
          %s249 = sshll.u32 %s241, 4
          %s250 = int_to_ptr.vmem [resolvable:$true] %s249
          %252 = dma.hbm_to_vmem [thread:$0]  %s247, 128, %s250, %s238
        $region44: #{tpu_custom_call.1} parent=39 // pred_fallthru
          _
      $region40: #{tpu_custom_call.1} parent=5 // pred_fallthru
        _
      %p253 = scmp.le.s32.totalorder 1, %s19
      %p254 = scmp.lt.s32.totalorder %s19, 3
      %p255 = pnand %p253, %p254
      %p256 = pneg %p255
      // Predicated region
      $region45: #{tpu_custom_call.1} parent=5 // pred_check
        _
      $region46: #{tpu_custom_call.1} parent=5 // pred_check_branch
        %258 = sbr.rel (%p255) target = $region48
      $region47: #{tpu_custom_call.1} parent=5 // pred_region
        %s259 = ssub.s32 %s19, 1
        %s260 = sand.u32 %s32, 1
        %s261 = scalar_lea.sflag [#allocation3], %s260
        %s262 = sand.u32 %s32, 1
        %s263 = smul.addr %s262, 8
        %s264 = scalar_lea.vmem [#allocation2], %s263
        // Predicated region
        $region49: #{tpu_custom_call.1} parent=47 // pred_check
          %p265 = pneg %p45
        $region50: #{tpu_custom_call.1} parent=47 // pred_check_branch
          %267 = sbr.rel (%p265) target = $region52
        $region51: #{tpu_custom_call.1} parent=47 // pred_region
          %268 = dma.done %s261, 128
        $region52: #{tpu_custom_call.1} parent=47 // pred_fallthru
          _
        %s269 = sand.u32 %s32, 1
        %s270 = scalar_lea.sflag [#allocation3], %s269
        %s271 = sand.u32 %s32, 1
        %s272 = smul.addr %s271, 8
        %s273 = scalar_lea.vmem [#allocation2], %s272
        %p274 = pneg %p45
        %p275 = pneg %p42
        %p276 = pneg %p66
        %p277 = pneg %p63
        %p278 = pneg %p87
        %p279 = pneg %p84
        %p280 = pneg %p108
        %p281 = pneg %p105
        %p282 = pneg %p129
        %p283 = pneg %p126
        %p284 = pneg %p150
        %p285 = pneg %p147
        %p286 = pneg %p171
        %p287 = pneg %p168
        %p288 = pneg %p197
        %p289 = pneg %p194
        %s290 = sand.u32 %s184, 1
        %s291 = scalar_lea.sflag [#allocation4], %s290
        %s292 = sand.u32 %s184, 1
        %s293 = smul.addr %s292, 8
        %s294 = scalar_lea.vmem [#allocation5], %s293
        %v295 = vld [vmem:[%s264] sm:$0xff]
        %v296 = vld [vmem:[%s1] sm:$0x3]
        %v297 = vld [vmem:[%s2] sm:$0x3]
        %299 = vset.pattern.permute.xlu0 0
        %300 = vperm.xlu0 %299, %v297
        %v301 = vpop.permute.xlu0 %300
        %v304 = vcombine.high %v295, %v295
        %vm305 = vcmask 31744
        %v307 = vsel %vm305, %v296, 0
        %vm309 = vcmask 1043456
        %v310 = vsel %vm309, %v295, 0
        %v312 = vsel %vm309, %v304, 0
        %314 = vmatprep.subr.mxu0 0.0
        %315 = vmatpush1.msra.mxu0 0.0
        %316 = vmatprep.subr.mxu0 0.0
        %317 = vmatpush1.msra.mxu0 0.0
        %318 = vmatprep.subr.mxu0 0.0
        %319 = vmatpush1.msra.mxu0 0.0
        %320 = vmatprep.subr.mxu0 0.0
        %321 = vmatpush1.msra.mxu0 0.0
        %322 = vmatprep.subr.mxu0 0.0
        %323 = vmatpush1.msra.mxu0 0.0
        %324 = vmatprep.subr.mxu0 0.0
        %325 = vmatpush1.msra.mxu0 0.0
        %326 = vmatprep.subr.mxu0 0.0
        %327 = vmatpush1.msra.mxu0 0.0
        %328 = vmatprep.subr.mxu0 0.0
        %329 = vmatpush1.msra.mxu0 0.0
        %330 = vmatprep.subr.mxu0 0.0
        %331 = vmatpush1.msra.mxu0 0.0
        %332 = vmatprep.subr.mxu0 0.0
        %333 = vmatpush1.msra.mxu0 0.0
        %334 = vmatprep.subr.mxu0 0.0
        %335 = vmatpush1.msra.mxu0 0.0
        %336 = vmatprep.subr.mxu0 0.0
        %337 = vmatpush1.msra.mxu0 0.0
        %338 = vmatprep.subr.mxu0 0.0
        %339 = vmatpush1.msra.mxu0 0.0
        %340 = vmatprep.subr.mxu0 0.0
        %341 = vmatpush1.msra.mxu0 0.0
        %342 = vmatprep.subr.mxu0 0.0
        %343 = vmatpush1.msra.mxu0 0.0
        %344 = vmatprep.subr.mxu0 %v312
        %345 = vmatpush1.msra.mxu0 %v310
        %346 = vmatprep.subr.mxu0 0.0
        %347 = vmatpush2.msra.mxu0 0.0
        %348 = vmatprep.subr.mxu0 0.0
        %349 = vmatpush2.msra.mxu0 0.0
        %350 = vmatprep.subr.mxu0 0.0
        %351 = vmatpush2.msra.mxu0 0.0
        %352 = vmatprep.subr.mxu0 0.0
        %353 = vmatpush2.msra.mxu0 0.0
        %354 = vmatprep.subr.mxu0 0.0
        %355 = vmatpush2.msra.mxu0 0.0
        %356 = vmatprep.subr.mxu0 0.0
        %357 = vmatpush2.msra.mxu0 0.0
        %358 = vmatprep.subr.mxu0 0.0
        %359 = vmatpush2.msra.mxu0 0.0
        %360 = vmatprep.subr.mxu0 0.0
        %361 = vmatpush2.msra.mxu0 0.0
        %362 = vmatprep.subr.mxu0 0.0
        %363 = vmatpush2.msra.mxu0 0.0
        %364 = vmatprep.subr.mxu0 0.0
        %365 = vmatpush2.msra.mxu0 0.0
        %366 = vmatprep.subr.mxu0 0.0
        %367 = vmatpush2.msra.mxu0 0.0
        %368 = vmatprep.subr.mxu0 0.0
        %369 = vmatpush2.msra.mxu0 0.0
        %370 = vmatprep.subr.mxu0 0.0
        %371 = vmatpush2.msra.mxu0 0.0
        %372 = vmatprep.subr.mxu0 0.0
        %373 = vmatpush2.msra.mxu0 0.0
        %374 = vmatprep.subr.mxu0 0.0
        %375 = vmatpush2.msra.mxu0 0.0
        %376 = vmatprep.subr.mxu0 0.0
        %377 = vmatpush2.msra.mxu0 0.0
        %378 = vmatprep.mubr.f32.mxu0 0.0
        %379 = vmatmul.mubr.f32.gmra.mxu0 %v307
        %v380 = vpop.f32.mrf.mxu0
        %v381 = vadd.f32 %v301, %v380
        %v382 = vpop.f32.mrf.mxu0
        %v383 = vadd.f32 %v301, %v382
        %384 = vdwg.mxu0
        %v385 = vmax.f32 %v381, 0.0
        %v386 = vmax.f32 %v383, 0.0
        %v387 = vlaneseq
        %v388 = vand.u32 %v387, 127
        %v389 = vadd.s32 %v388, 128
        %vm390 = vcmp.lt.s32.totalorder %v388, 0
        %v391 = vsub.s32 0, %v388
        %v392 = vsel %vm390, %v391, %v388
        %v393 = vshrl.u32 %v392, 4
        %v394 = vand.u32 %v392, 15
        %v395 = vsub.s32 0, %v394
        %v396 = vsel %vm390, %v395, %v394
        %vm397 = vcmp.lt.s32.totalorder %v389, 0
        %v398 = vsub.s32 0, %v389
        %v399 = vsel %vm397, %v398, %v389
        %v400 = vshrl.u32 %v399, 4
        %v401 = vand.u32 %v399, 15
        %v402 = vsub.s32 0, %v401
        %v403 = vsel %vm397, %v402, %v401
        %vm404 = vcmp.ne.s32.totalorder %v396, 0
        %vm405 = vcmp.ne.s32.totalorder %v403, 0
        %vm406 = vcmp.lt.s32.totalorder %v396, 0
        %vm407 = vcmp.lt.s32.totalorder %v403, 0
        %vm408 = vmand %vm406, %vm404
        %vm409 = vmand %vm407, %vm405
        %v410 = vadd.s32 %v396, 16
        %v411 = vadd.s32 %v403, 16
        %v412 = vsel %vm408, %v410, %v396
        %v413 = vsel %vm409, %v411, %v403
        %416 = vrot.lane.b32.xlu0 %v385, 17
        %v417 = vpop.permute.xlu0 %416
        %418 = vrot.lane.b32.xlu0 %v386, 17
        %v419 = vpop.permute.xlu0 %418
        %vm420 = vcmask 138240
        %v421 = vsel %vm420, %v417, %v419
        %v424 = vsel %vm420, 0.0, %v417
        %v425 = vadd.s32 %v412, 4294967295
        %v426 = vadd.s32 %v413, 4294967295
        %vm427 = vcmp.ge.s32.totalorder %v425, 0
        %vm428 = vcmp.ge.s32.totalorder %v426, 0
        %vm429 = vcmp.lt.s32.totalorder %v425, 16
        %vm430 = vcmp.lt.s32.totalorder %v426, 16
        %vm431 = vmand %vm427, %vm429
        %vm432 = vmand %vm428, %vm430
        %v433 = vsel %vm431, 1, 0
        %v434 = vsel %vm432, 1, 0
        %vm435 = vcmp.eq.s32.totalorder %v433, 1
        %vm436 = vcmp.eq.s32.totalorder %v434, 1
        %v437 = vsel %vm435, %v424, 0.0
        %v438 = vsel %vm436, %v421, 0.0
        %v439 = vld [vmem:[%s3] sm:$0x3]
        %441 = vset.pattern.permute.xlu0 0
        %442 = vperm.xlu0 %441, %v439
        %v443 = vpop.permute.xlu0 %442
        %v445 = vmul.f32 %v437, %v443
        %v446 = vmul.f32 %v438, %v443
        %v447 = vadd.f32 %v445, 0.0
        %v448 = vadd.f32 %v446, 0.0
        %449 = vrot.lane.b32.xlu0 %v385, 16
        %v450 = vpop.permute.xlu0 %449
        %451 = vrot.lane.b32.xlu0 %v386, 16
        %v452 = vpop.permute.xlu0 %451
        %vm453 = vcmask 130048
        %v454 = vsel %vm453, %v450, %v452
        %v457 = vsel %vm453, 0.0, %v450
        %458 = vset.pattern.permute.xlu0 1
        %459 = vperm.xlu0 %458, %v439
        %v460 = vpop.permute.xlu0 %459
        %v462 = vmul.f32 %v457, %v460
        %v463 = vmul.f32 %v454, %v460
        %v464 = vadd.f32 %v447, %v462
        %v465 = vadd.f32 %v448, %v463
        %466 = vrot.lane.b32.xlu0 %v385, 15
        %v467 = vpop.permute.xlu0 %466
        %468 = vrot.lane.b32.xlu0 %v386, 15
        %v469 = vpop.permute.xlu0 %468
        %vm470 = vcmask 121856
        %v471 = vsel %vm470, %v467, %v469
        %v474 = vsel %vm470, 0.0, %v467
        %v475 = vadd.s32 %v412, 1
        %v476 = vadd.s32 %v413, 1
        %vm477 = vcmp.ge.s32.totalorder %v475, 0
        %vm478 = vcmp.ge.s32.totalorder %v476, 0
        %vm479 = vcmp.lt.s32.totalorder %v475, 16
        %vm480 = vcmp.lt.s32.totalorder %v476, 16
        %vm481 = vmand %vm477, %vm479
        %vm482 = vmand %vm478, %vm480
        %v483 = vsel %vm481, 1, 0
        %v484 = vsel %vm482, 1, 0
        %vm485 = vcmp.eq.s32.totalorder %v483, 1
        %vm486 = vcmp.eq.s32.totalorder %v484, 1
        %v487 = vsel %vm485, %v474, 0.0
        %v488 = vsel %vm486, %v471, 0.0
        %489 = vset.pattern.permute.xlu0 2
        %490 = vperm.xlu0 %489, %v439
        %v491 = vpop.permute.xlu0 %490
        %v493 = vmul.f32 %v487, %v491
        %v494 = vmul.f32 %v488, %v491
        %v495 = vadd.f32 %v464, %v493
        %v496 = vadd.f32 %v465, %v494
        %497 = vrot.lane.b32.xlu0 %v385, 1
        %v498 = vpop.permute.xlu0 %497
        %499 = vrot.lane.b32.xlu0 %v386, 1
        %v500 = vpop.permute.xlu0 %499
        %vm501 = vcmask 7168
        %v502 = vsel %vm501, %v498, %v500
        %v505 = vsel %vm501, 0.0, %v498
        %v506 = vsel %vm435, %v505, 0.0
        %v507 = vsel %vm436, %v502, 0.0
        %508 = vset.pattern.permute.xlu0 3
        %509 = vperm.xlu0 %508, %v439
        %v510 = vpop.permute.xlu0 %509
        %v512 = vmul.f32 %v506, %v510
        %v513 = vmul.f32 %v507, %v510
        %v514 = vadd.f32 %v495, %v512
        %v515 = vadd.f32 %v496, %v513
        %516 = vset.pattern.permute.xlu0 4
        %517 = vperm.xlu0 %516, %v439
        %v518 = vpop.permute.xlu0 %517
        %v520 = vmul.f32 %v385, %v518
        %v521 = vmul.f32 %v386, %v518
        %v522 = vadd.f32 %v514, %v520
        %v523 = vadd.f32 %v515, %v521
        %524 = vrot.lane.b32.xlu0 %v385, 127
        %v525 = vpop.permute.xlu0 %524
        %526 = vrot.lane.b32.xlu0 %v386, 127
        %v527 = vpop.permute.xlu0 %526
        %vm528 = vcmask 1039360
        %v529 = vsel %vm528, %v525, %v527
        %v532 = vsel %vm528, %v527, 0.0
        %v533 = vsel %vm485, %v529, 0.0
        %v534 = vsel %vm486, %v532, 0.0
        %535 = vset.pattern.permute.xlu0 5
        %536 = vperm.xlu0 %535, %v439
        %v537 = vpop.permute.xlu0 %536
        %v539 = vmul.f32 %v533, %v537
        %v540 = vmul.f32 %v534, %v537
        %v541 = vadd.f32 %v522, %v539
        %v542 = vadd.f32 %v523, %v540
        %543 = vrot.lane.b32.xlu0 %v385, 113
        %v544 = vpop.permute.xlu0 %543
        %545 = vrot.lane.b32.xlu0 %v386, 113
        %v546 = vpop.permute.xlu0 %545
        %vm547 = vcmask 924672
        %v548 = vsel %vm547, %v544, %v546
        %v551 = vsel %vm547, %v546, 0.0
        %v552 = vsel %vm435, %v548, 0.0
        %v553 = vsel %vm436, %v551, 0.0
        %554 = vset.pattern.permute.xlu0 6
        %555 = vperm.xlu0 %554, %v439
        %v556 = vpop.permute.xlu0 %555
        %v558 = vmul.f32 %v552, %v556
        %v559 = vmul.f32 %v553, %v556
        %v560 = vadd.f32 %v541, %v558
        %v561 = vadd.f32 %v542, %v559
        %562 = vrot.lane.b32.xlu0 %v385, 112
        %v563 = vpop.permute.xlu0 %562
        %564 = vrot.lane.b32.xlu0 %v386, 112
        %v565 = vpop.permute.xlu0 %564
        %vm566 = vcmask 916480
        %v567 = vsel %vm566, %v563, %v565
        %v570 = vsel %vm566, %v565, 0.0
        %571 = vset.pattern.permute.xlu0 7
        %572 = vperm.xlu0 %571, %v439
        %v573 = vpop.permute.xlu0 %572
        %v575 = vmul.f32 %v567, %v573
        %v576 = vmul.f32 %v570, %v573
        %v577 = vadd.f32 %v560, %v575
        %v578 = vadd.f32 %v561, %v576
        %579 = vrot.lane.b32.xlu0 %v385, 111
        %v580 = vpop.permute.xlu0 %579
        %581 = vrot.lane.b32.xlu0 %v386, 111
        %v582 = vpop.permute.xlu0 %581
        %vm583 = vcmask 908288
        %v584 = vsel %vm583, %v580, %v582
        %v587 = vsel %vm583, %v582, 0.0
        %v588 = vsel %vm485, %v584, 0.0
        %v589 = vsel %vm486, %v587, 0.0
        %590 = vset.pattern.permute.xlu0 8
        %591 = vperm.xlu0 %590, %v439
        %v592 = vpop.permute.xlu0 %591
        %v594 = vmul.f32 %v588, %v592
        %v595 = vmul.f32 %v589, %v592
        %v596 = vadd.f32 %v577, %v594
        %v597 = vadd.f32 %v578, %v595
        %v598 = vld [vmem:[%s4] sm:$0x3]
        %600 = vset.pattern.permute.xlu0 0
        %601 = vperm.xlu0 %600, %v598
        %v602 = vpop.permute.xlu0 %601
        %v604 = vadd.f32 %v596, %v602
        %v605 = vadd.f32 %v597, %v602
        %v606 = vld [vmem:[%s5] sm:$0x3]
        %v607 = vld [vmem:[%s6] sm:$0x3]
        %609 = vset.pattern.permute.xlu0 0
        %610 = vperm.xlu0 %609, %v607
        %v611 = vpop.permute.xlu0 %610
        %vm613 = vcmask 15360
        %v615 = vsel %vm613, %v606, 0
        %vm617 = vcmask 1041408
        %v619 = vsel %vm617, %v604, 0
        %v622 = vsel %vm617, %v605, 0
        %624 = vmatprep.subr.mxu0 0.0
        %625 = vmatpush1.msra.mxu0 0.0
        %626 = vmatprep.subr.mxu0 0.0
        %627 = vmatpush1.msra.mxu0 0.0
        %628 = vmatprep.subr.mxu0 0.0
        %629 = vmatpush1.msra.mxu0 0.0
        %630 = vmatprep.subr.mxu0 0.0
        %631 = vmatpush1.msra.mxu0 0.0
        %632 = vmatprep.subr.mxu0 0.0
        %633 = vmatpush1.msra.mxu0 0.0
        %634 = vmatprep.subr.mxu0 0.0
        %635 = vmatpush1.msra.mxu0 0.0
        %636 = vmatprep.subr.mxu0 0.0
        %637 = vmatpush1.msra.mxu0 0.0
        %638 = vmatprep.subr.mxu0 0.0
        %639 = vmatpush1.msra.mxu0 0.0
        %640 = vmatprep.subr.mxu0 0.0
        %641 = vmatpush1.msra.mxu0 0.0
        %642 = vmatprep.subr.mxu0 0.0
        %643 = vmatpush1.msra.mxu0 0.0
        %644 = vmatprep.subr.mxu0 0.0
        %645 = vmatpush1.msra.mxu0 0.0
        %646 = vmatprep.subr.mxu0 0.0
        %647 = vmatpush1.msra.mxu0 0.0
        %648 = vmatprep.subr.mxu0 0.0
        %649 = vmatpush1.msra.mxu0 0.0
        %650 = vmatprep.subr.mxu0 0.0
        %651 = vmatpush1.msra.mxu0 0.0
        %652 = vmatprep.subr.mxu0 0.0
        %653 = vmatpush1.msra.mxu0 0.0
        %654 = vmatprep.subr.mxu0 %v622
        %655 = vmatpush1.msra.mxu0 %v619
        %656 = vmatprep.subr.mxu0 0.0
        %657 = vmatpush2.msra.mxu0 0.0
        %658 = vmatprep.subr.mxu0 0.0
        %659 = vmatpush2.msra.mxu0 0.0
        %660 = vmatprep.subr.mxu0 0.0
        %661 = vmatpush2.msra.mxu0 0.0
        %662 = vmatprep.subr.mxu0 0.0
        %663 = vmatpush2.msra.mxu0 0.0
        %664 = vmatprep.subr.mxu0 0.0
        %665 = vmatpush2.msra.mxu0 0.0
        %666 = vmatprep.subr.mxu0 0.0
        %667 = vmatpush2.msra.mxu0 0.0
        %668 = vmatprep.subr.mxu0 0.0
        %669 = vmatpush2.msra.mxu0 0.0
        %670 = vmatprep.subr.mxu0 0.0
        %671 = vmatpush2.msra.mxu0 0.0
        %672 = vmatprep.subr.mxu0 0.0
        %673 = vmatpush2.msra.mxu0 0.0
        %674 = vmatprep.subr.mxu0 0.0
        %675 = vmatpush2.msra.mxu0 0.0
        %676 = vmatprep.subr.mxu0 0.0
        %677 = vmatpush2.msra.mxu0 0.0
        %678 = vmatprep.subr.mxu0 0.0
        %679 = vmatpush2.msra.mxu0 0.0
        %680 = vmatprep.subr.mxu0 0.0
        %681 = vmatpush2.msra.mxu0 0.0
        %682 = vmatprep.subr.mxu0 0.0
        %683 = vmatpush2.msra.mxu0 0.0
        %684 = vmatprep.subr.mxu0 0.0
        %685 = vmatpush2.msra.mxu0 0.0
        %686 = vmatprep.subr.mxu0 0.0
        %687 = vmatpush2.msra.mxu0 0.0
        %688 = vmatprep.mubr.f32.mxu0 0.0
        %689 = vmatmul.mubr.f32.gmra.mxu0 %v615
        %v690 = vpop.f32.mrf.mxu0
        %v691 = vadd.f32 %v611, %v690
        %v692 = vpop.f32.mrf.mxu0
        %v693 = vadd.f32 %v611, %v692
        %694 = vdwg.mxu0
        %v695 = vmax.f32 %v691, 0.0
        %v696 = vmax.f32 %v693, 0.0
        %v700 = vrot.slane %v695, 6
        %v701 = vrot.slane %v696, 6
        %v704 = vsel %vm617, %v295, %v700
        %v705 = vsel %vm617, %v304, %v701
        %v708 = vcombine.low %v704, %v705
        %710 = vst [vmem:[%s294] sm:$0xff] %v708
        %s711 = sand.u32 %s184, 1
        %s712 = scalar_lea.sflag [#allocation4], %s711
        %s713 = sand.u32 %s184, 1
        %s714 = smul.addr %s713, 8
        %s715 = scalar_lea.vmem [#allocation5], %s714
        // Predicated region
        $region53: #{tpu_custom_call.1} parent=47 // pred_check
          %p716 = pneg %p194
        $region54: #{tpu_custom_call.1} parent=47 // pred_check_branch
          %718 = sbr.rel (%p716) target = $region56
        $region55: #{tpu_custom_call.1} parent=47 // pred_region
          %s720 = ssub.s32 128, 128
          %721 = vsyncadd %s712, %s720
          %s722 = smul.addr %s24, 2
          %s723 = smul.addr %s722, 64
          %s724 = scalar_lea.hbm %s7, %s723
          %s726 = sshll.u32 %s715, 4
          %s727 = int_to_ptr.vmem [resolvable:$true] %s726
          %729 = dma.vmem_to_hbm [thread:$0]  %s727, 128, %s724, %s712
        $region56: #{tpu_custom_call.1} parent=47 // pred_fallthru
          _
      $region48: #{tpu_custom_call.1} parent=5 // pred_fallthru
        _
      %p730 = scmp.le.s32.totalorder 2, %s19
      // Predicated region
      $region57: #{tpu_custom_call.1} parent=5 // pred_check
        %p731 = pneg %p730
      $region58: #{tpu_custom_call.1} parent=5 // pred_check_branch
        %733 = sbr.rel (%p731) target = $region60
      $region59: #{tpu_custom_call.1} parent=5 // pred_region
        %s734 = ssub.s32 %s19, 2
        // Predicated region
        $region61: #{tpu_custom_call.1} parent=59 // pred_check
          %p735 = pneg %p200
        $region62: #{tpu_custom_call.1} parent=59 // pred_check_branch
          %737 = sbr.rel (%p735) target = $region64
        $region63: #{tpu_custom_call.1} parent=59 // pred_region
          %s738 = sand.u32 %s185, 1
          %s739 = scalar_lea.sflag [#allocation4], %s738
          %s740 = sand.u32 %s185, 1
          %s741 = smul.addr %s740, 8
          %s742 = scalar_lea.vmem [#allocation5], %s741
          %743 = dma.done %s739, 128
        $region64: #{tpu_custom_call.1} parent=59 // pred_fallthru
          _
      $region60: #{tpu_custom_call.1} parent=5 // pred_fallthru
        _
    $region6: #{tpu_custom_call.1} parent=1 // loop_footer
      %s23 = sadd.s32 1, %s19
    $region7: #{tpu_custom_call.1} parent=1 // loop_footer_branch
      %18 = sbr.rel target = $region3
    $region8: #{tpu_custom_call.1} parent=1 // loop_exit
      _
    %744 = vsyncpa [#allocation3], 1
    %s745 = scalar_lea.sflag [#allocation3], 1
    %746 = vsyncpa %s745, 1
    %747 = vsyncpa [#allocation4], 1
    %s748 = scalar_lea.sflag [#allocation4], 1
    %749 = vsyncpa %s748, 1

</llo_original>
